<compile_context>
chip_gen: v5e
topology: v5e:2x2
jax: 0.10.0
libtpu: 0.0.40
codegen_flags: <defaults>
</compile_context>

<pallas_src>
import math
import functools

import jax
import jax.numpy as jnp
from jax.experimental import pallas as pl
from jax.experimental.pallas import tpu as pltpu


def _mha_kernel(x_ref, wqkv_ref, bqkv_ref, wo_ref, bo_ref, o_ref,
                q_scr, k_scr, v_scr, attn_scr, *, num_heads, d_k, tq):
    # x_ref    : (1, S, D)  bf16  — full sequence, resident across query tiles
    # wqkv_ref : (D, 3D)    bf16  — fused [Wq | Wk | Wv] (pre-transposed)
    # bqkv_ref : (1, 3D)    f32
    # wo_ref   : (D, D)     bf16
    # bo_ref   : (1, D)     f32
    # o_ref    : (1, TQ, D) f32
    # q/k/v_scr: (H, S, d_k) bf16 scratch, filled once per batch element
    # attn_scr : (TQ, D)     bf16 scratch, lane-dense combined heads
    qi = pl.program_id(1)
    D = num_heads * d_k

    # ---- once per batch element: fused QKV projection + head split --------
    @pl.when(qi == 0)
    def _():
        x = x_ref[0]                                              # (S, D) bf16
        qkv = jnp.dot(x, wqkv_ref[...],
                      preferred_element_type=jnp.float32) + bqkv_ref[...]
        inv_sqrt_dk = 1.0 / math.sqrt(d_k)
        for h in range(num_heads):          # H cheap slice+store ops, once per batch
            lo = h * d_k
            q_scr[h] = (qkv[:, lo:lo + d_k] * inv_sqrt_dk).astype(jnp.bfloat16)
            k_scr[h] = qkv[:, D + lo:D + lo + d_k].astype(jnp.bfloat16)
            v_scr[h] = qkv[:, 2 * D + lo:2 * D + lo + d_k].astype(jnp.bfloat16)

    # ---- per query tile: batched (over heads) scaled-dot-product attention -
    q_start = pl.multiple_of(qi * tq, tq)
    q_t = q_scr[:, pl.ds(q_start, tq), :]                          # (H, TQ, d_k) bf16

    # scores: contract on d_k directly (no explicit k.T), bf16 in / f32 out
    s = jnp.einsum('hqd,hkd->hqk', q_t, k_scr[...],
                   preferred_element_type=jnp.float32)             # (H, TQ, S)

    # numerically stable softmax in f32 (matches torch.softmax)
    s = s - jnp.max(s, axis=-1, keepdims=True)
    e = jnp.exp(s)
    probs = e * pl.reciprocal(jnp.sum(e, axis=-1, keepdims=True), approx=True)

    ctx = jnp.einsum('hqk,hkd->hqd', probs.astype(jnp.bfloat16), v_scr[...],
                     preferred_element_type=jnp.float32)           # (H, TQ, d_k)

    # combine_heads: write each head into a lane-dense (TQ, D) scratch slab
    for h in range(num_heads):
        lo = h * d_k
        attn_scr[:, lo:lo + d_k] = ctx[h].astype(jnp.bfloat16)

    out = jnp.dot(attn_scr[...], wo_ref[...],
                  preferred_element_type=jnp.float32) + bo_ref[...]
    o_ref[0] = out.astype(o_ref.dtype)


def _pick_q_tile(s, max_tile=128):
    """Largest multiple-of-8 divisor of s that is <= max_tile (or s itself)."""
    if s <= max_tile:
        return s
    for t in range(max_tile, 7, -8):
        if s % t == 0:
            return t
    return s


def multi_head_attention(x, params, *, num_heads):
    """x: (B, S, D) float32.  params: dict with torch-convention weights."""
    B, S, D = x.shape
    assert D % num_heads == 0, "d_model must be divisible by num_heads"
    d_k = D // num_heads

    # torch Linear: y = x @ W.T + b  ->  pre-transpose to (D_in, D_out); fuse QKV.
    w_qkv = jnp.concatenate(
        [params["wq"].T, params["wk"].T, params["wv"].T], axis=1
    ).astype(jnp.bfloat16)                                          # (D, 3D)
    b_qkv = jnp.concatenate(
        [params["bq"], params["bk"], params["bv"]]
    ).reshape(1, 3 * D).astype(jnp.float32)                         # (1, 3D)
    w_o = params["wo"].T.astype(jnp.bfloat16)                       # (D, D)
    b_o = params["bo"].reshape(1, D).astype(jnp.float32)            # (1, D)

    x_bf16 = x.astype(jnp.bfloat16)

    tq = _pick_q_tile(S)
    n_q = S // tq

    kernel = functools.partial(_mha_kernel, num_heads=num_heads, d_k=d_k, tq=tq)

    return pl.pallas_call(
        kernel,
        out_shape=jax.ShapeDtypeStruct((B, S, D), x.dtype),
        grid_spec=pltpu.PrefetchScalarGridSpec(
            num_scalar_prefetch=0,
            grid=(B, n_q),
            in_specs=[
                pl.BlockSpec((1, S, D), lambda b, qi: (b, 0, 0)),    # x (resident over qi)
                pl.BlockSpec((D, 3 * D), lambda b, qi: (0, 0)),      # fused W_qkv
                pl.BlockSpec((1, 3 * D), lambda b, qi: (0, 0)),      # fused b_qkv
                pl.BlockSpec((D, D), lambda b, qi: (0, 0)),          # W_o
                pl.BlockSpec((1, D), lambda b, qi: (0, 0)),          # b_o
            ],
            out_specs=pl.BlockSpec((1, tq, D), lambda b, qi: (b, qi, 0)),
            scratch_shapes=[
                pltpu.VMEM((num_heads, S, d_k), jnp.bfloat16),       # Q (pre-scaled)
                pltpu.VMEM((num_heads, S, d_k), jnp.bfloat16),       # K
                pltpu.VMEM((num_heads, S, d_k), jnp.bfloat16),       # V
                pltpu.VMEM((tq, D), jnp.bfloat16),                   # combined heads
            ],
        ),
        compiler_params=pltpu.CompilerParams(
            dimension_semantics=("parallel", "arbitrary"),
            vmem_limit_bytes=32 * 1024 * 1024,
        ),
    )(x_bf16, w_qkv, b_qkv, w_o, b_o)


def _reference(x, params, *, num_heads):
    """Pure-JAX f32 reference reproducing the torch module exactly."""
    B, S, D = x.shape
    d_k = D // num_heads

    def linear(v, w, b):
        return v @ w.T + b

    q = linear(x, params["wq"], params["bq"])
    k = linear(x, params["wk"], params["bk"])
    v = linear(x, params["wv"], params["bv"])

    def split(t):  # (B, S, D) -> (B, H, S, d_k)
        return t.reshape(B, S, num_heads, d_k).transpose(0, 2, 1, 3)

    qh, kh, vh = split(q), split(k), split(v)
    scores = jnp.einsum("bhqd,bhkd->bhqk", qh, kh) / math.sqrt(d_k)
    probs = jax.nn.softmax(scores, axis=-1)
    attn = jnp.einsum("bhqk,bhkd->bhqd", probs, vh)
    combined = attn.transpose(0, 2, 1, 3).reshape(B, S, D)
    return linear(combined, params["wo"], params["bo"])


def _init_params(key, d_model):
    keys = jax.random.split(key, 8)
    bound = 1.0 / math.sqrt(d_model)

    def w(k):
        return jax.random.uniform(k, (d_model, d_model), jnp.float32, -bound, bound)

    def b(k):
        return jax.random.uniform(k, (d_model,), jnp.float32, -bound, bound)

    return {
        "wq": w(keys[0]), "bq": b(keys[1]),
        "wk": w(keys[2]), "bk": b(keys[3]),
        "wv": w(keys[4]), "bv": b(keys[5]),
        "wo": w(keys[6]), "bo": b(keys[7]),
    }


if __name__ == "__main__":
    B, S, D, H = 2, 8, 32, 4   # batch, seq, d_model, num_heads  (d_k = 8)

    key = jax.random.PRNGKey(0)
    k_x, k_p = jax.random.split(key)
    x = jax.random.normal(k_x, (B, S, D), jnp.float32)
    params = _init_params(k_p, D)

    out = multi_head_attention(x, params, num_heads=H)
    out = jax.block_until_ready(out)

    ref = _reference(x, params, num_heads=H)
    assert out.shape == (B, S, D)
    # bf16 MXU operands + approx reciprocal -> relaxed tolerance vs f32 reference
    max_err = float(jnp.max(jnp.abs(out - ref)))
    assert jnp.allclose(out, ref, atol=3e-2, rtol=3e-2), \
        f"mismatch vs reference (max abs err={max_err})"

    print("KERNEL_OK")
</pallas_src>

<mosaic_0001>
module attributes {stable_mosaic.version = 11 : i64} {
  func.func @_mha_kernel(%arg0: i32, %arg1: i32, %arg2: memref<1x8x32xbf16, #tpu.memory_space<vmem>>, %arg3: memref<32x96xbf16, #tpu.memory_space<vmem>>, %arg4: memref<1x96xf32, #tpu.memory_space<vmem>>, %arg5: memref<32x32xbf16, #tpu.memory_space<vmem>>, %arg6: memref<1x32xf32, #tpu.memory_space<vmem>>, %arg7: memref<1x8x32xf32, #tpu.memory_space<vmem>>, %arg8: memref<4x8x8xbf16, #tpu.memory_space<vmem>>, %arg9: memref<4x8x8xbf16, #tpu.memory_space<vmem>>, %arg10: memref<4x8x8xbf16, #tpu.memory_space<vmem>>, %arg11: memref<8x32xbf16, #tpu.memory_space<vmem>>) attributes {dimension_semantics = [#tpu.dimension_semantics<parallel>, #tpu.dimension_semantics<arbitrary>], iteration_bounds = array<i64: 2, 1>, scalar_prefetch = 0 : i64, scratch_operands = 4 : i64, tpu.core_type = #tpu.core_type<tc>, window_params = [{transform_indices = @transform_0, window_bounds = array<i64: 1, 8, 32>}, {pipeline_mode = #tpu.pipeline_mode<synchronous>, transform_indices = @transform_1, window_bounds = array<i64: 32, 96>}, {pipeline_mode = #tpu.pipeline_mode<synchronous>, transform_indices = @transform_2, window_bounds = array<i64: 1, 96>}, {pipeline_mode = #tpu.pipeline_mode<synchronous>, transform_indices = @transform_3, window_bounds = array<i64: 32, 32>}, {pipeline_mode = #tpu.pipeline_mode<synchronous>, transform_indices = @transform_4, window_bounds = array<i64: 1, 32>}, {transform_indices = @transform_5, window_bounds = array<i64: 1, 8, 32>}]} {
    %c0_i32 = arith.constant 0 : i32
    %0 = arith.cmpi eq, %arg1, %c0_i32 : i32
    %1 = arith.extui %0 : i1 to i32
    %c0_i32_0 = arith.constant 0 : i32
    %2 = arith.cmpi ne, %1, %c0_i32_0 : i32
    scf.if %2 {
      %c0_26 = arith.constant 0 : index
      %c0_27 = arith.constant 0 : index
      %c0_28 = arith.constant 0 : index
      %47 = vector.load %arg2[%c0_26, %c0_27, %c0_28] : memref<1x8x32xbf16, #tpu.memory_space<vmem>>, vector<1x8x32xbf16>
      %48 = vector.shape_cast %47 : vector<1x8x32xbf16> to vector<8x32xbf16>
      %c0_29 = arith.constant 0 : index
      %c0_30 = arith.constant 0 : index
      %49 = vector.load %arg3[%c0_29, %c0_30] : memref<32x96xbf16, #tpu.memory_space<vmem>>, vector<32x96xbf16>
      %cst_31 = arith.constant dense<0.000000e+00> : vector<8x96xf32>
      %50 = tpu.matmul %48, %49, %cst_31 {dimension_numbers = #tpu.dot_dimension_numbers<[1], [0], [0], [1], [0, 0, 1, 1], [], []>} : vector<8x32xbf16>, vector<32x96xbf16>, vector<8x96xf32> -> vector<8x96xf32>
      %c0_32 = arith.constant 0 : index
      %c0_33 = arith.constant 0 : index
      %51 = vector.load %arg4[%c0_32, %c0_33] : memref<1x96xf32, #tpu.memory_space<vmem>>, vector<1x96xf32>
      %52 = vector.broadcast %51 : vector<1x96xf32> to vector<8x96xf32>
      %53 = arith.addf %50, %52 : vector<8x96xf32>
      %54 = vector.extract_strided_slice %53 {offsets = [0, 0], sizes = [8, 8], strides = [1, 1]} : vector<8x96xf32> to vector<8x8xf32>
      %cst_34 = arith.constant 0.353553385 : f32
      %55 = vector.broadcast %cst_34 : f32 to vector<8x8xf32>
      %56 = arith.mulf %54, %55 : vector<8x8xf32>
      %57 = arith.truncf %56 : vector<8x8xf32> to vector<8x8xbf16>
      %c0_35 = arith.constant 0 : index
      %c0_36 = arith.constant 0 : index
      %c0_37 = arith.constant 0 : index
      %58 = vector.load %arg8[%c0_35, %c0_36, %c0_37] : memref<4x8x8xbf16, #tpu.memory_space<vmem>>, vector<1x8x8xbf16>
      %59 = vector.shape_cast %58 : vector<1x8x8xbf16> to vector<8x8xbf16>
      %60 = vector.shape_cast %57 : vector<8x8xbf16> to vector<1x8x8xbf16>
      tpu.vector_store %arg8[%c0_35, %c0_36, %c0_37], %60 {strides = array<i32>} : memref<4x8x8xbf16, #tpu.memory_space<vmem>>, vector<1x8x8xbf16>,
      %61 = vector.extract_strided_slice %53 {offsets = [0, 32], sizes = [8, 8], strides = [1, 1]} : vector<8x96xf32> to vector<8x8xf32>
      %62 = arith.truncf %61 : vector<8x8xf32> to vector<8x8xbf16>
      %c0_38 = arith.constant 0 : index
      %c0_39 = arith.constant 0 : index
      %c0_40 = arith.constant 0 : index
      %63 = vector.load %arg9[%c0_38, %c0_39, %c0_40] : memref<4x8x8xbf16, #tpu.memory_space<vmem>>, vector<1x8x8xbf16>
      %64 = vector.shape_cast %63 : vector<1x8x8xbf16> to vector<8x8xbf16>
      %65 = vector.shape_cast %62 : vector<8x8xbf16> to vector<1x8x8xbf16>
      tpu.vector_store %arg9[%c0_38, %c0_39, %c0_40], %65 {strides = array<i32>} : memref<4x8x8xbf16, #tpu.memory_space<vmem>>, vector<1x8x8xbf16>,
      %66 = vector.extract_strided_slice %53 {offsets = [0, 64], sizes = [8, 8], strides = [1, 1]} : vector<8x96xf32> to vector<8x8xf32>
      %67 = arith.truncf %66 : vector<8x8xf32> to vector<8x8xbf16>
      %c0_41 = arith.constant 0 : index
      %c0_42 = arith.constant 0 : index
      %c0_43 = arith.constant 0 : index
      %68 = vector.load %arg10[%c0_41, %c0_42, %c0_43] : memref<4x8x8xbf16, #tpu.memory_space<vmem>>, vector<1x8x8xbf16>
      %69 = vector.shape_cast %68 : vector<1x8x8xbf16> to vector<8x8xbf16>
      %70 = vector.shape_cast %67 : vector<8x8xbf16> to vector<1x8x8xbf16>
      tpu.vector_store %arg10[%c0_41, %c0_42, %c0_43], %70 {strides = array<i32>} : memref<4x8x8xbf16, #tpu.memory_space<vmem>>, vector<1x8x8xbf16>,
      %71 = vector.extract_strided_slice %53 {offsets = [0, 8], sizes = [8, 8], strides = [1, 1]} : vector<8x96xf32> to vector<8x8xf32>
      %cst_44 = arith.constant 0.353553385 : f32
      %72 = vector.broadcast %cst_44 : f32 to vector<8x8xf32>
      %73 = arith.mulf %71, %72 : vector<8x8xf32>
      %74 = arith.truncf %73 : vector<8x8xf32> to vector<8x8xbf16>
      %c1 = arith.constant 1 : index
      %c0_45 = arith.constant 0 : index
      %c0_46 = arith.constant 0 : index
      %75 = vector.load %arg8[%c1, %c0_45, %c0_46] : memref<4x8x8xbf16, #tpu.memory_space<vmem>>, vector<1x8x8xbf16>
      %76 = vector.shape_cast %75 : vector<1x8x8xbf16> to vector<8x8xbf16>
      %77 = vector.shape_cast %74 : vector<8x8xbf16> to vector<1x8x8xbf16>
      tpu.vector_store %arg8[%c1, %c0_45, %c0_46], %77 {strides = array<i32>} : memref<4x8x8xbf16, #tpu.memory_space<vmem>>, vector<1x8x8xbf16>,
      %78 = vector.extract_strided_slice %53 {offsets = [0, 40], sizes = [8, 8], strides = [1, 1]} : vector<8x96xf32> to vector<8x8xf32>
      %79 = arith.truncf %78 : vector<8x8xf32> to vector<8x8xbf16>
      %c1_47 = arith.constant 1 : index
      %c0_48 = arith.constant 0 : index
      %c0_49 = arith.constant 0 : index
      %80 = vector.load %arg9[%c1_47, %c0_48, %c0_49] : memref<4x8x8xbf16, #tpu.memory_space<vmem>>, vector<1x8x8xbf16>
      %81 = vector.shape_cast %80 : vector<1x8x8xbf16> to vector<8x8xbf16>
      %82 = vector.shape_cast %79 : vector<8x8xbf16> to vector<1x8x8xbf16>
      tpu.vector_store %arg9[%c1_47, %c0_48, %c0_49], %82 {strides = array<i32>} : memref<4x8x8xbf16, #tpu.memory_space<vmem>>, vector<1x8x8xbf16>,
      %83 = vector.extract_strided_slice %53 {offsets = [0, 72], sizes = [8, 8], strides = [1, 1]} : vector<8x96xf32> to vector<8x8xf32>
      %84 = arith.truncf %83 : vector<8x8xf32> to vector<8x8xbf16>
      %c1_50 = arith.constant 1 : index
      %c0_51 = arith.constant 0 : index
      %c0_52 = arith.constant 0 : index
      %85 = vector.load %arg10[%c1_50, %c0_51, %c0_52] : memref<4x8x8xbf16, #tpu.memory_space<vmem>>, vector<1x8x8xbf16>
      %86 = vector.shape_cast %85 : vector<1x8x8xbf16> to vector<8x8xbf16>
      %87 = vector.shape_cast %84 : vector<8x8xbf16> to vector<1x8x8xbf16>
      tpu.vector_store %arg10[%c1_50, %c0_51, %c0_52], %87 {strides = array<i32>} : memref<4x8x8xbf16, #tpu.memory_space<vmem>>, vector<1x8x8xbf16>,
      %88 = vector.extract_strided_slice %53 {offsets = [0, 16], sizes = [8, 8], strides = [1, 1]} : vector<8x96xf32> to vector<8x8xf32>
      %cst_53 = arith.constant 0.353553385 : f32
      %89 = vector.broadcast %cst_53 : f32 to vector<8x8xf32>
      %90 = arith.mulf %88, %89 : vector<8x8xf32>
      %91 = arith.truncf %90 : vector<8x8xf32> to vector<8x8xbf16>
      %c2 = arith.constant 2 : index
      %c0_54 = arith.constant 0 : index
      %c0_55 = arith.constant 0 : index
      %92 = vector.load %arg8[%c2, %c0_54, %c0_55] : memref<4x8x8xbf16, #tpu.memory_space<vmem>>, vector<1x8x8xbf16>
      %93 = vector.shape_cast %92 : vector<1x8x8xbf16> to vector<8x8xbf16>
      %94 = vector.shape_cast %91 : vector<8x8xbf16> to vector<1x8x8xbf16>
      tpu.vector_store %arg8[%c2, %c0_54, %c0_55], %94 {strides = array<i32>} : memref<4x8x8xbf16, #tpu.memory_space<vmem>>, vector<1x8x8xbf16>,
      %95 = vector.extract_strided_slice %53 {offsets = [0, 48], sizes = [8, 8], strides = [1, 1]} : vector<8x96xf32> to vector<8x8xf32>
      %96 = arith.truncf %95 : vector<8x8xf32> to vector<8x8xbf16>
      %c2_56 = arith.constant 2 : index
      %c0_57 = arith.constant 0 : index
      %c0_58 = arith.constant 0 : index
      %97 = vector.load %arg9[%c2_56, %c0_57, %c0_58] : memref<4x8x8xbf16, #tpu.memory_space<vmem>>, vector<1x8x8xbf16>
      %98 = vector.shape_cast %97 : vector<1x8x8xbf16> to vector<8x8xbf16>
      %99 = vector.shape_cast %96 : vector<8x8xbf16> to vector<1x8x8xbf16>
      tpu.vector_store %arg9[%c2_56, %c0_57, %c0_58], %99 {strides = array<i32>} : memref<4x8x8xbf16, #tpu.memory_space<vmem>>, vector<1x8x8xbf16>,
      %100 = vector.extract_strided_slice %53 {offsets = [0, 80], sizes = [8, 8], strides = [1, 1]} : vector<8x96xf32> to vector<8x8xf32>
      %101 = arith.truncf %100 : vector<8x8xf32> to vector<8x8xbf16>
      %c2_59 = arith.constant 2 : index
      %c0_60 = arith.constant 0 : index
      %c0_61 = arith.constant 0 : index
      %102 = vector.load %arg10[%c2_59, %c0_60, %c0_61] : memref<4x8x8xbf16, #tpu.memory_space<vmem>>, vector<1x8x8xbf16>
      %103 = vector.shape_cast %102 : vector<1x8x8xbf16> to vector<8x8xbf16>
      %104 = vector.shape_cast %101 : vector<8x8xbf16> to vector<1x8x8xbf16>
      tpu.vector_store %arg10[%c2_59, %c0_60, %c0_61], %104 {strides = array<i32>} : memref<4x8x8xbf16, #tpu.memory_space<vmem>>, vector<1x8x8xbf16>,
      %105 = vector.extract_strided_slice %53 {offsets = [0, 24], sizes = [8, 8], strides = [1, 1]} : vector<8x96xf32> to vector<8x8xf32>
      %cst_62 = arith.constant 0.353553385 : f32
      %106 = vector.broadcast %cst_62 : f32 to vector<8x8xf32>
      %107 = arith.mulf %105, %106 : vector<8x8xf32>
      %108 = arith.truncf %107 : vector<8x8xf32> to vector<8x8xbf16>
      %c3 = arith.constant 3 : index
      %c0_63 = arith.constant 0 : index
      %c0_64 = arith.constant 0 : index
      %109 = vector.load %arg8[%c3, %c0_63, %c0_64] : memref<4x8x8xbf16, #tpu.memory_space<vmem>>, vector<1x8x8xbf16>
      %110 = vector.shape_cast %109 : vector<1x8x8xbf16> to vector<8x8xbf16>
      %111 = vector.shape_cast %108 : vector<8x8xbf16> to vector<1x8x8xbf16>
      tpu.vector_store %arg8[%c3, %c0_63, %c0_64], %111 {strides = array<i32>} : memref<4x8x8xbf16, #tpu.memory_space<vmem>>, vector<1x8x8xbf16>,
      %112 = vector.extract_strided_slice %53 {offsets = [0, 56], sizes = [8, 8], strides = [1, 1]} : vector<8x96xf32> to vector<8x8xf32>
      %113 = arith.truncf %112 : vector<8x8xf32> to vector<8x8xbf16>
      %c3_65 = arith.constant 3 : index
      %c0_66 = arith.constant 0 : index
      %c0_67 = arith.constant 0 : index
      %114 = vector.load %arg9[%c3_65, %c0_66, %c0_67] : memref<4x8x8xbf16, #tpu.memory_space<vmem>>, vector<1x8x8xbf16>
      %115 = vector.shape_cast %114 : vector<1x8x8xbf16> to vector<8x8xbf16>
      %116 = vector.shape_cast %113 : vector<8x8xbf16> to vector<1x8x8xbf16>
      tpu.vector_store %arg9[%c3_65, %c0_66, %c0_67], %116 {strides = array<i32>} : memref<4x8x8xbf16, #tpu.memory_space<vmem>>, vector<1x8x8xbf16>,
      %117 = vector.extract_strided_slice %53 {offsets = [0, 88], sizes = [8, 8], strides = [1, 1]} : vector<8x96xf32> to vector<8x8xf32>
      %118 = arith.truncf %117 : vector<8x8xf32> to vector<8x8xbf16>
      %c3_68 = arith.constant 3 : index
      %c0_69 = arith.constant 0 : index
      %c0_70 = arith.constant 0 : index
      %119 = vector.load %arg10[%c3_68, %c0_69, %c0_70] : memref<4x8x8xbf16, #tpu.memory_space<vmem>>, vector<1x8x8xbf16>
      %120 = vector.shape_cast %119 : vector<1x8x8xbf16> to vector<8x8xbf16>
      %121 = vector.shape_cast %118 : vector<8x8xbf16> to vector<1x8x8xbf16>
      tpu.vector_store %arg10[%c3_68, %c0_69, %c0_70], %121 {strides = array<i32>} : memref<4x8x8xbf16, #tpu.memory_space<vmem>>, vector<1x8x8xbf16>,
    } else {
    }
    %c8_i32 = arith.constant 8 : i32
    %3 = arith.muli %arg1, %c8_i32 : i32
    %4 = tpu.assume_multiple %3, 8 : i32
    %c0 = arith.constant 0 : index
    %5 = arith.index_cast %4 : i32 to index
    %c0_1 = arith.constant 0 : index
    %6 = vector.load %arg8[%c0, %5, %c0_1] : memref<4x8x8xbf16, #tpu.memory_space<vmem>>, vector<4x8x8xbf16>
    %c0_2 = arith.constant 0 : index
    %c0_3 = arith.constant 0 : index
    %c0_4 = arith.constant 0 : index
    %7 = vector.load %arg9[%c0_2, %c0_3, %c0_4] : memref<4x8x8xbf16, #tpu.memory_space<vmem>>, vector<4x8x8xbf16>
    "tpu.trace_start"() <{level = 10 : i32, message = "hqd,hkd->hqk"}> : () -> ()
    %cst = arith.constant dense<0.000000e+00> : vector<4x8x8xf32>
    %8 = tpu.matmul %6, %7, %cst {dimension_numbers = #tpu.dot_dimension_numbers<[2], [2], [1], [1], [0, 0, 0, 1, 1, 1], [0], [0]>} : vector<4x8x8xbf16>, vector<4x8x8xbf16>, vector<4x8x8xf32> -> vector<4x8x8xf32>
    "tpu.trace_stop"() : () -> ()
    %cst_5 = arith.constant dense<0xFF800000> : vector<4x8xf32>
    %9 = vector.multi_reduction <maximumf>, %8, %cst_5 [2] : vector<4x8x8xf32> to vector<4x8xf32>
    %10 = vector.shape_cast %9 : vector<4x8xf32> to vector<4x8x1xf32>
    %11 = vector.broadcast %10 : vector<4x8x1xf32> to vector<4x8x8xf32>
    %12 = arith.subf %8, %11 : vector<4x8x8xf32>
    %13 = math.exp %12 : vector<4x8x8xf32>
    %cst_6 = arith.constant dense<0.000000e+00> : vector<4x8xf32>
    %14 = vector.multi_reduction <add>, %13, %cst_6 [2] : vector<4x8x8xf32> to vector<4x8xf32>
    %15 = vector.shape_cast %14 : vector<4x8xf32> to vector<4x8x1xf32>
    %16 = tpu.reciprocal %15 {approx = true} : vector<4x8x1xf32> -> vector<4x8x1xf32>
    %17 = vector.broadcast %16 : vector<4x8x1xf32> to vector<4x8x8xf32>
    %18 = arith.mulf %13, %17 : vector<4x8x8xf32>
    %19 = arith.truncf %18 : vector<4x8x8xf32> to vector<4x8x8xbf16>
    %c0_7 = arith.constant 0 : index
    %c0_8 = arith.constant 0 : index
    %c0_9 = arith.constant 0 : index
    %20 = vector.load %arg10[%c0_7, %c0_8, %c0_9] : memref<4x8x8xbf16, #tpu.memory_space<vmem>>, vector<4x8x8xbf16>
    "tpu.trace_start"() <{level = 10 : i32, message = "hqk,hkd->hqd"}> : () -> ()
    %cst_10 = arith.constant dense<0.000000e+00> : vector<4x8x8xf32>
    %21 = tpu.matmul %19, %20, %cst_10 {dimension_numbers = #tpu.dot_dimension_numbers<[2], [1], [1], [2], [0, 0, 0, 1, 1, 2], [0], [0]>} : vector<4x8x8xbf16>, vector<4x8x8xbf16>, vector<4x8x8xf32> -> vector<4x8x8xf32>
    "tpu.trace_stop"() : () -> ()
    %22 = vector.extract_strided_slice %21 {offsets = [0, 0, 0], sizes = [1, 8, 8], strides = [1, 1, 1]} : vector<4x8x8xf32> to vector<1x8x8xf32>
    %23 = vector.shape_cast %22 : vector<1x8x8xf32> to vector<8x8xf32>
    %24 = arith.truncf %23 : vector<8x8xf32> to vector<8x8xbf16>
    %c0_11 = arith.constant 0 : index
    %c0_12 = arith.constant 0 : index
    %25 = vector.load %arg11[%c0_11, %c0_12] : memref<8x32xbf16, #tpu.memory_space<vmem>>, vector<8x8xbf16>
    tpu.vector_store %arg11[%c0_11, %c0_12], %24 {strides = array<i32>} : memref<8x32xbf16, #tpu.memory_space<vmem>>, vector<8x8xbf16>,
    %26 = vector.extract_strided_slice %21 {offsets = [1, 0, 0], sizes = [1, 8, 8], strides = [1, 1, 1]} : vector<4x8x8xf32> to vector<1x8x8xf32>
    %27 = vector.shape_cast %26 : vector<1x8x8xf32> to vector<8x8xf32>
    %28 = arith.truncf %27 : vector<8x8xf32> to vector<8x8xbf16>
    %c0_13 = arith.constant 0 : index
    %c8 = arith.constant 8 : index
    %29 = vector.load %arg11[%c0_13, %c8] : memref<8x32xbf16, #tpu.memory_space<vmem>>, vector<8x8xbf16>
    tpu.vector_store %arg11[%c0_13, %c8], %28 {strides = array<i32>} : memref<8x32xbf16, #tpu.memory_space<vmem>>, vector<8x8xbf16>,
    %30 = vector.extract_strided_slice %21 {offsets = [2, 0, 0], sizes = [1, 8, 8], strides = [1, 1, 1]} : vector<4x8x8xf32> to vector<1x8x8xf32>
    %31 = vector.shape_cast %30 : vector<1x8x8xf32> to vector<8x8xf32>
    %32 = arith.truncf %31 : vector<8x8xf32> to vector<8x8xbf16>
    %c0_14 = arith.constant 0 : index
    %c16 = arith.constant 16 : index
    %33 = vector.load %arg11[%c0_14, %c16] : memref<8x32xbf16, #tpu.memory_space<vmem>>, vector<8x8xbf16>
    tpu.vector_store %arg11[%c0_14, %c16], %32 {strides = array<i32>} : memref<8x32xbf16, #tpu.memory_space<vmem>>, vector<8x8xbf16>,
    %34 = vector.extract_strided_slice %21 {offsets = [3, 0, 0], sizes = [1, 8, 8], strides = [1, 1, 1]} : vector<4x8x8xf32> to vector<1x8x8xf32>
    %35 = vector.shape_cast %34 : vector<1x8x8xf32> to vector<8x8xf32>
    %36 = arith.truncf %35 : vector<8x8xf32> to vector<8x8xbf16>
    %c0_15 = arith.constant 0 : index
    %c24 = arith.constant 24 : index
    %37 = vector.load %arg11[%c0_15, %c24] : memref<8x32xbf16, #tpu.memory_space<vmem>>, vector<8x8xbf16>
    tpu.vector_store %arg11[%c0_15, %c24], %36 {strides = array<i32>} : memref<8x32xbf16, #tpu.memory_space<vmem>>, vector<8x8xbf16>,
    %c0_16 = arith.constant 0 : index
    %c0_17 = arith.constant 0 : index
    %38 = vector.load %arg11[%c0_16, %c0_17] : memref<8x32xbf16, #tpu.memory_space<vmem>>, vector<8x32xbf16>
    %c0_18 = arith.constant 0 : index
    %c0_19 = arith.constant 0 : index
    %39 = vector.load %arg5[%c0_18, %c0_19] : memref<32x32xbf16, #tpu.memory_space<vmem>>, vector<32x32xbf16>
    %cst_20 = arith.constant dense<0.000000e+00> : vector<8x32xf32>
    %40 = tpu.matmul %38, %39, %cst_20 {dimension_numbers = #tpu.dot_dimension_numbers<[1], [0], [0], [1], [0, 0, 1, 1], [], []>} : vector<8x32xbf16>, vector<32x32xbf16>, vector<8x32xf32> -> vector<8x32xf32>
    %c0_21 = arith.constant 0 : index
    %c0_22 = arith.constant 0 : index
    %41 = vector.load %arg6[%c0_21, %c0_22] : memref<1x32xf32, #tpu.memory_space<vmem>>, vector<1x32xf32>
    %42 = vector.broadcast %41 : vector<1x32xf32> to vector<8x32xf32>
    %43 = arith.addf %40, %42 : vector<8x32xf32>
    %c0_23 = arith.constant 0 : index
    %c0_24 = arith.constant 0 : index
    %c0_25 = arith.constant 0 : index
    %44 = vector.load %arg7[%c0_23, %c0_24, %c0_25] : memref<1x8x32xf32, #tpu.memory_space<vmem>>, vector<1x8x32xf32>
    %45 = vector.shape_cast %44 : vector<1x8x32xf32> to vector<8x32xf32>
    %46 = vector.shape_cast %43 : vector<8x32xf32> to vector<1x8x32xf32>
    tpu.vector_store %arg7[%c0_23, %c0_24, %c0_25], %46 {strides = array<i32>} : memref<1x8x32xf32, #tpu.memory_space<vmem>>, vector<1x8x32xf32>,
    return
  }
  func.func @transform_0(%arg0: i32, %arg1: i32) -> (i32, i32, i32) {
    %c0_i32 = arith.constant 0 : i32
    %c0_i32_0 = arith.constant 0 : i32
    %c0_i32_1 = arith.constant 0 : i32
    return %arg0, %c0_i32, %c0_i32_0 : i32, i32, i32
  }
  func.func @transform_1(%arg0: i32, %arg1: i32) -> (i32, i32) {
    %c0_i32 = arith.constant 0 : i32
    %c0_i32_0 = arith.constant 0 : i32
    %c0_i32_1 = arith.constant 0 : i32
    return %c0_i32, %c0_i32_0 : i32, i32
  }
  func.func @transform_2(%arg0: i32, %arg1: i32) -> (i32, i32) {
    %c0_i32 = arith.constant 0 : i32
    %c0_i32_0 = arith.constant 0 : i32
    %c0_i32_1 = arith.constant 0 : i32
    return %c0_i32, %c0_i32_0 : i32, i32
  }
  func.func @transform_3(%arg0: i32, %arg1: i32) -> (i32, i32) {
    %c0_i32 = arith.constant 0 : i32
    %c0_i32_0 = arith.constant 0 : i32
    %c0_i32_1 = arith.constant 0 : i32
    return %c0_i32, %c0_i32_0 : i32, i32
  }
  func.func @transform_4(%arg0: i32, %arg1: i32) -> (i32, i32) {
    %c0_i32 = arith.constant 0 : i32
    %c0_i32_0 = arith.constant 0 : i32
    %c0_i32_1 = arith.constant 0 : i32
    return %c0_i32, %c0_i32_0 : i32, i32
  }
  func.func @transform_5(%arg0: i32, %arg1: i32) -> (i32, i32, i32) {
    %c0_i32 = arith.constant 0 : i32
    %c0_i32_0 = arith.constant 0 : i32
    return %arg0, %arg1, %c0_i32 : i32, i32, i32
  }
}

</mosaic_0001>

<llo_original>
// kernel: tpu_custom_call.1
$region0: #{tpu_custom_call.1}
  #allocation0 [shape = 'u32[]', space=smem, size = 0x4, offset = 0x4, fixed_abs, tag = 'smem constant byte address 0x4 - core index']
  #allocation1 [shape = 'u32[72,128]{1,0:T(1,128)}', space=vmem, size = 0x9000, scoped, tag = 'internal scratch']
  #allocation2 [shape = 'bf16[4,8,8]{2,1,0:T(8,128)(2,1)}', space=vmem, size = 0x2000, scoped, tag = 'scratch operand']
  #allocation3 [shape = 'bf16[4,8,8]{2,1,0:T(8,128)(2,1)}', space=vmem, size = 0x2000, scoped, tag = 'scratch operand']
  #allocation4 [shape = 'bf16[4,8,8]{2,1,0:T(8,128)(2,1)}', space=vmem, size = 0x2000, scoped, tag = 'scratch operand']
  #allocation5 [shape = 'bf16[8,32]{1,0:T(8,128)(2,1)}', space=vmem, size = 0x800, scoped, tag = 'scratch operand']
  %s0 = inlined_call_operand.hbm [shape: bf16[2,8,32], index: 0, kind: input, shape index: {}]
  %s1 = inlined_call_operand.hbm [shape: bf16[32,96], index: 1, kind: input, shape index: {}]
  %s2 = inlined_call_operand.vmem [shape: f32[1,96], index: 2, kind: input, shape index: {}]
  %s3 = inlined_call_operand.hbm [shape: bf16[32,32], index: 3, kind: input, shape index: {}]
  %s4 = inlined_call_operand.vmem [shape: f32[1,32], index: 4, kind: input, shape index: {}]
  %s5 = inlined_call_operand.hbm [shape: f32[2,8,32], index: 5, kind: output, shape index: {}]
  %s6 = sld [smem:[#allocation0]]
  $region69: #{tpu_custom_call.1} parent=0
    _
  %s8 = ssub.s32 1, %s6
  %s9 = scalar_select 0, %s8, %s6
  $region1: #{tpu_custom_call.1} parent=0
    #allocation6 [shape = 'u8[4096]{0}', space=vmem, size = 0x1000, scoped, tag = 'input window, operand 0']
    #allocation7 [shape = 's32[2]{0}', space=sflag, size = 0x8, scoped, tag = 'scoped memory for tpu_custom_call.1']
    #allocation8 [shape = 's32[2]{0}', space=sflag, size = 0x8, scoped, tag = 'scoped memory for tpu_custom_call.1']
    #allocation9 [shape = 'u8[8192]{0}', space=vmem, size = 0x2000, scoped, tag = 'input window, operand 1, single buffered']
    #allocation10 [shape = 's32[1]{0}', space=sflag, size = 0x4, scoped, tag = 'scoped memory for tpu_custom_call.1']
    #allocation11 [shape = 'u8[8192]{0}', space=vmem, size = 0x2000, scoped, tag = 'input window, operand 3, single buffered']
    #allocation12 [shape = 'u8[8192]{0}', space=vmem, size = 0x2000, scoped, tag = 'output window, operand 0']
    %10 = vsyncpa [#allocation7], 0
    %s11 = scalar_lea.sflag [#allocation7], 1
    %12 = vsyncpa %s11, 0
    %13 = vsyncpa [#allocation10], 0
    %14 = vsyncpa [#allocation8], 0
    %s15 = scalar_lea.sflag [#allocation8], 1
    %16 = vsyncpa %s15, 0
    loop: start=0, step=1, limit=4
    $region2: #{tpu_custom_call.1} parent=1 // loop_pre_header
      _
    $region3: #{tpu_custom_call.1} parent=1 // loop_header
      %s18 = sphi 0, %s22
      %p19 = scmp.ge.s32.totalorder %s18, 4
      %s25 = sphi 0, %s37
      %s26 = sphi 0, %s33
      %s27 = sphi 0, %s25
      %s28 = sphi 0, %s26
      %s29 = sphi 0, %s27
      %s30 = sphi 0, %s28
      %s40 = sphi 0, %s42
      %s43 = sphi 0, %s40
      %s44 = sphi 0, %s43
      %s60 = sphi 0, %s44
      %s64 = sphi 0, %s64
      %s66 = sphi 0, %s64
      %s67 = sphi 0, %s66
      %s81 = sphi 0, %s67
      %s85 = sphi 0, %s85
      %s87 = sphi 0, %s85
      %s88 = sphi 0, %s87
      %s102 = sphi 0, %s88
      %s106 = sphi 0, %s106
      %s108 = sphi 0, %s106
      %s109 = sphi 0, %s108
      %s123 = sphi 0, %s109
      %s127 = sphi 0, %s127
      %s129 = sphi 0, %s127
      %s130 = sphi 0, %s129
      %s144 = sphi 0, %s130
      %s152 = sphi 0, %s154
      %s155 = sphi 0, %s152
      %s156 = sphi 0, %s155
      %s172 = sphi 0, %s156
    $region4: #{tpu_custom_call.1} parent=1 // loop_header_branch
      %21 = sbr.rel (%p19) target = $region8
    $region5: #{tpu_custom_call.1} parent=1 // loop_body
      %s23 = ssub.s32 %s18, 1
      %s24 = ssub.s32 %s18, 2
      %s31 = sadd.s32 1, %s26
      %p32 = scmp.ge.s32.totalorder %s31, 1
      %s33 = scalar_select %p32, 0, %s31
      %s34 = sadd.s32 1, %s25
      %s35 = scalar_select %p32, %s34, %s25
      %p36 = scmp.ge.s32.totalorder %s35, 2
      %s37 = scalar_select %p36, 0, %s35
      %s38 = ssub.s32 %s25, %s37
      %p39 = scmp.eq.s32.totalorder %s38, 0
      %s41 = sadd.s32 %s40, 1
      %s42 = scalar_select %p39, %s40, %s41
      %p45 = pneg %p39
      %p46 = scmp.eq.s32.totalorder %s18, 1
      %p47 = por %p45, %p46
      %p48 = scmp.ne.s32.totalorder %s40, %s43
      %p49 = scmp.eq.s32.totalorder %s18, 0
      %p50 = por %p48, %p49
      %p51 = scmp.ne.s32.totalorder %s40, %s43
      %p52 = scmp.eq.s32.totalorder %s23, 1
      %p53 = por %p51, %p52
      %p54 = scmp.ne.s32.totalorder %s43, %s44
      %p55 = scmp.eq.s32.totalorder %s23, 0
      %p56 = por %p54, %p55
      %p57 = scmp.ne.s32.totalorder %s43, %s44
      %p58 = scmp.eq.s32.totalorder %s24, 1
      %p59 = por %p57, %p58
      %p61 = scmp.ne.s32.totalorder %s44, %s60
      %p62 = scmp.eq.s32.totalorder %s24, 0
      %p63 = por %p61, %p62
      %s65 = sadd.s32 %s64, 1
      %p68 = scmp.eq.s32.totalorder %s18, 1
      %p69 = scmp.ne.s32.totalorder %s64, %s66
      %p70 = scmp.eq.s32.totalorder %s18, 0
      %p71 = por %p69, %p70
      %p72 = scmp.ne.s32.totalorder %s64, %s66
      %p73 = scmp.eq.s32.totalorder %s23, 1
      %p74 = por %p72, %p73
      %p75 = scmp.ne.s32.totalorder %s66, %s67
      %p76 = scmp.eq.s32.totalorder %s23, 0
      %p77 = por %p75, %p76
      %p78 = scmp.ne.s32.totalorder %s66, %s67
      %p79 = scmp.eq.s32.totalorder %s24, 1
      %p80 = por %p78, %p79
      %p82 = scmp.ne.s32.totalorder %s67, %s81
      %p83 = scmp.eq.s32.totalorder %s24, 0
      %p84 = por %p82, %p83
      %s86 = sadd.s32 %s85, 1
      %p89 = scmp.eq.s32.totalorder %s18, 1
      %p90 = scmp.ne.s32.totalorder %s85, %s87
      %p91 = scmp.eq.s32.totalorder %s18, 0
      %p92 = por %p90, %p91
      %p93 = scmp.ne.s32.totalorder %s85, %s87
      %p94 = scmp.eq.s32.totalorder %s23, 1
      %p95 = por %p93, %p94
      %p96 = scmp.ne.s32.totalorder %s87, %s88
      %p97 = scmp.eq.s32.totalorder %s23, 0
      %p98 = por %p96, %p97
      %p99 = scmp.ne.s32.totalorder %s87, %s88
      %p100 = scmp.eq.s32.totalorder %s24, 1
      %p101 = por %p99, %p100
      %p103 = scmp.ne.s32.totalorder %s88, %s102
      %p104 = scmp.eq.s32.totalorder %s24, 0
      %p105 = por %p103, %p104
      %s107 = sadd.s32 %s106, 1
      %p110 = scmp.eq.s32.totalorder %s18, 1
      %p111 = scmp.ne.s32.totalorder %s106, %s108
      %p112 = scmp.eq.s32.totalorder %s18, 0
      %p113 = por %p111, %p112
      %p114 = scmp.ne.s32.totalorder %s106, %s108
      %p115 = scmp.eq.s32.totalorder %s23, 1
      %p116 = por %p114, %p115
      %p117 = scmp.ne.s32.totalorder %s108, %s109
      %p118 = scmp.eq.s32.totalorder %s23, 0
      %p119 = por %p117, %p118
      %p120 = scmp.ne.s32.totalorder %s108, %s109
      %p121 = scmp.eq.s32.totalorder %s24, 1
      %p122 = por %p120, %p121
      %p124 = scmp.ne.s32.totalorder %s109, %s123
      %p125 = scmp.eq.s32.totalorder %s24, 0
      %p126 = por %p124, %p125
      %s128 = sadd.s32 %s127, 1
      %p131 = scmp.eq.s32.totalorder %s18, 1
      %p132 = scmp.ne.s32.totalorder %s127, %s129
      %p133 = scmp.eq.s32.totalorder %s18, 0
      %p134 = por %p132, %p133
      %p135 = scmp.ne.s32.totalorder %s127, %s129
      %p136 = scmp.eq.s32.totalorder %s23, 1
      %p137 = por %p135, %p136
      %p138 = scmp.ne.s32.totalorder %s129, %s130
      %p139 = scmp.eq.s32.totalorder %s23, 0
      %p140 = por %p138, %p139
      %p141 = scmp.ne.s32.totalorder %s129, %s130
      %p142 = scmp.eq.s32.totalorder %s24, 1
      %p143 = por %p141, %p142
      %p145 = scmp.ne.s32.totalorder %s130, %s144
      %p146 = scmp.eq.s32.totalorder %s24, 0
      %p147 = por %p145, %p146
      %s148 = ssub.s32 %s25, %s37
      %s149 = ssub.s32 %s26, %s33
      %s150 = sor.u32 %s148, %s149
      %p151 = scmp.eq.s32.totalorder %s150, 0
      %s153 = sadd.s32 %s152, 1
      %s154 = scalar_select %p151, %s152, %s153
      %p157 = pneg %p151
      %p158 = scmp.eq.s32.totalorder %s18, 1
      %p159 = por %p157, %p158
      %p160 = scmp.ne.s32.totalorder %s152, %s155
      %p161 = scmp.eq.s32.totalorder %s18, 0
      %p162 = por %p160, %p161
      %p163 = scmp.ne.s32.totalorder %s152, %s155
      %p164 = scmp.eq.s32.totalorder %s23, 1
      %p165 = por %p163, %p164
      %p166 = scmp.ne.s32.totalorder %s155, %s156
      %p167 = scmp.eq.s32.totalorder %s23, 0
      %p168 = por %p166, %p167
      %p169 = scmp.ne.s32.totalorder %s155, %s156
      %p170 = scmp.eq.s32.totalorder %s24, 1
      %p171 = por %p169, %p170
      %p173 = scmp.ne.s32.totalorder %s156, %s172
      %p174 = scmp.eq.s32.totalorder %s24, 0
      %p175 = por %p173, %p174
      %p176 = scmp.le.s32.totalorder 1, %s18
      %p177 = scmp.lt.s32.totalorder %s18, 3
      %p178 = pnand %p176, %p177
      %p179 = pneg %p178
      // Predicated region
      $region9: #{tpu_custom_call.1} parent=5 // pred_check
        _
      $region10: #{tpu_custom_call.1} parent=5 // pred_check_branch
        %181 = sbr.rel (%p178) target = $region12
      $region11: #{tpu_custom_call.1} parent=5 // pred_region
        %s182 = ssub.s32 %s18, 1
        // Predicated region
        $region13: #{tpu_custom_call.1} parent=11 // pred_check
          %p183 = pneg %p77
        $region14: #{tpu_custom_call.1} parent=11 // pred_check_branch
          %185 = sbr.rel (%p183) target = $region16
        $region15: #{tpu_custom_call.1} parent=11 // pred_region
          %187 = vsyncadd [#allocation10], 0
          %s188 = sshll.u32 %s1, 4
          %s189 = int_to_ptr.hbm [resolvable:$true] %s188
          %s190 = sshll.u32 [#allocation9], 4
          %s191 = int_to_ptr.vmem [resolvable:$true] %s190
          %196 = dma.hbm_to_vmem [thread:$0]  %s189, 256, %s191, [#allocation10], 64, 64, 4
        $region16: #{tpu_custom_call.1} parent=11 // pred_fallthru
          _
        // Predicated region
        $region17: #{tpu_custom_call.1} parent=11 // pred_check
          %p197 = pneg %p98
        $region18: #{tpu_custom_call.1} parent=11 // pred_check_branch
          %199 = sbr.rel (%p197) target = $region20
        $region19: #{tpu_custom_call.1} parent=11 // pred_region
          _
        $region20: #{tpu_custom_call.1} parent=11 // pred_fallthru
          _
        // Predicated region
        $region21: #{tpu_custom_call.1} parent=11 // pred_check
          %p200 = pneg %p119
        $region22: #{tpu_custom_call.1} parent=11 // pred_check_branch
          %202 = sbr.rel (%p200) target = $region24
        $region23: #{tpu_custom_call.1} parent=11 // pred_region
          %204 = vsyncadd [#allocation10], 0
          %s205 = sshll.u32 %s3, 4
          %s206 = int_to_ptr.hbm [resolvable:$true] %s205
          %s207 = sshll.u32 [#allocation11], 4
          %s208 = int_to_ptr.vmem [resolvable:$true] %s207
          %213 = dma.hbm_to_vmem [thread:$0]  %s206, 256, %s208, [#allocation10], 64, 64, 4
        $region24: #{tpu_custom_call.1} parent=11 // pred_fallthru
          _
        // Predicated region
        $region25: #{tpu_custom_call.1} parent=11 // pred_check
          %p214 = pneg %p140
        $region26: #{tpu_custom_call.1} parent=11 // pred_check_branch
          %216 = sbr.rel (%p214) target = $region28
        $region27: #{tpu_custom_call.1} parent=11 // pred_region
          _
        $region28: #{tpu_custom_call.1} parent=11 // pred_fallthru
          _
      $region12: #{tpu_custom_call.1} parent=5 // pred_fallthru
        _
      %p217 = scmp.lt.s32.totalorder %s18, 2
      // Predicated region
      $region29: #{tpu_custom_call.1} parent=5 // pred_check
        %p218 = pneg %p217
      $region30: #{tpu_custom_call.1} parent=5 // pred_check_branch
        %220 = sbr.rel (%p218) target = $region32
      $region31: #{tpu_custom_call.1} parent=5 // pred_region
        // Predicated region
        $region33: #{tpu_custom_call.1} parent=31 // pred_check
          %p221 = pneg %p50
        $region34: #{tpu_custom_call.1} parent=31 // pred_check_branch
          %223 = sbr.rel (%p221) target = $region36
        $region35: #{tpu_custom_call.1} parent=31 // pred_region
          %s224 = sand.u32 %s40, 1
          %s225 = scalar_lea.sflag [#allocation7], %s224
          %s226 = sand.u32 %s40, 1
          %s227 = smul.addr %s226, 4
          %s228 = scalar_lea.vmem [#allocation6], %s227
          %230 = vsyncadd %s225, 0
          %s231 = smul.addr %s25, 4
          %s232 = scalar_lea.hbm %s0, %s231
          %s234 = sshll.u32 %s232, 4
          %s235 = int_to_ptr.hbm [resolvable:$true] %s234
          %s236 = sshll.u32 %s228, 4
          %s237 = int_to_ptr.vmem [resolvable:$true] %s236
          %239 = dma.hbm_to_vmem [thread:$0]  %s235, 64, %s237, %s225
        $region36: #{tpu_custom_call.1} parent=31 // pred_fallthru
          _
      $region32: #{tpu_custom_call.1} parent=5 // pred_fallthru
        _
      %p240 = scmp.le.s32.totalorder 1, %s18
      %p241 = scmp.lt.s32.totalorder %s18, 3
      %p242 = pnand %p240, %p241
      %p243 = pneg %p242
      // Predicated region
      $region37: #{tpu_custom_call.1} parent=5 // pred_check
        _
      $region38: #{tpu_custom_call.1} parent=5 // pred_check_branch
        %245 = sbr.rel (%p242) target = $region40
      $region39: #{tpu_custom_call.1} parent=5 // pred_region
        %s246 = ssub.s32 %s18, 1
        %s247 = sand.u32 %s43, 1
        %s248 = scalar_lea.sflag [#allocation7], %s247
        %s249 = sand.u32 %s43, 1
        %s250 = smul.addr %s249, 4
        %s251 = scalar_lea.vmem [#allocation6], %s250
        // Predicated region
        $region41: #{tpu_custom_call.1} parent=39 // pred_check
          %p252 = pneg %p56
        $region42: #{tpu_custom_call.1} parent=39 // pred_check_branch
          %254 = sbr.rel (%p252) target = $region44
        $region43: #{tpu_custom_call.1} parent=39 // pred_region
          %256 = dma.done %s248, 64
        $region44: #{tpu_custom_call.1} parent=39 // pred_fallthru
          _
        // Predicated region
        $region45: #{tpu_custom_call.1} parent=39 // pred_check
          %p257 = pneg %p77
        $region46: #{tpu_custom_call.1} parent=39 // pred_check_branch
          %259 = sbr.rel (%p257) target = $region48
        $region47: #{tpu_custom_call.1} parent=39 // pred_region
          %261 = dma.done [#allocation10], 256
        $region48: #{tpu_custom_call.1} parent=39 // pred_fallthru
          _
        // Predicated region
        $region49: #{tpu_custom_call.1} parent=39 // pred_check
          %p262 = pneg %p119
        $region50: #{tpu_custom_call.1} parent=39 // pred_check_branch
          %264 = sbr.rel (%p262) target = $region52
        $region51: #{tpu_custom_call.1} parent=39 // pred_region
          %266 = dma.done [#allocation10], 256
        $region52: #{tpu_custom_call.1} parent=39 // pred_fallthru
          _
        %s267 = sand.u32 %s43, 1
        %s268 = scalar_lea.sflag [#allocation7], %s267
        %s269 = sand.u32 %s43, 1
        %s270 = smul.addr %s269, 4
        %s271 = scalar_lea.vmem [#allocation6], %s270
        %p272 = pneg %p56
        %p273 = pneg %p53
        %p274 = pneg %p77
        %p275 = pneg %p74
        %p276 = pneg %p98
        %p277 = pneg %p95
        %p278 = pneg %p119
        %p279 = pneg %p116
        %p280 = pneg %p140
        %p281 = pneg %p137
        %p282 = pneg %p168
        %p283 = pneg %p165
        %s284 = sand.u32 %s155, 1
        %s285 = scalar_lea.sflag [#allocation8], %s284
        %s286 = sand.u32 %s155, 1
        %s287 = smul.addr %s286, 8
        %s288 = scalar_lea.vmem [#allocation12], %s287
        %p290 = scmp.eq.s32.totalorder %s28, 0
        // Predicated region
        $region53: #{tpu_custom_call.1} parent=39 // pred_check
          %p291 = pneg %p290
        $region54: #{tpu_custom_call.1} parent=39 // pred_check_branch
          %293 = sbr.rel (%p291) target = $region56
        $region55: #{tpu_custom_call.1} parent=39 // pred_region
          %v294 = vld [vmem:[%s251] sm:$0xf]
          %v295 = vld [vmem:[#allocation9] sm:$0xf]
          %v296 = vld [vmem:[#allocation9 + $0x4] sm:$0xf]
          %v297 = vld [vmem:[#allocation9 + $0x8] sm:$0xf]
          %v298 = vld [vmem:[#allocation9 + $0xc] sm:$0xf]
          %v299 = vld [vmem:[%s2] sm:$0x1]
          %v301 = vperm.slane %v299, 0
          %v307 = vunpack.c.l.b16 %v295
          %v308 = vunpack.c.l.b16 %v296
          %v309 = vunpack.c.l.b16 %v297
          %v310 = vunpack.c.l.b16 %v298
          %v311 = vpack.c.b16 %v308, %v307
          %v312 = vpack.c.b16 %v310, %v309
          %vm315 = vcmask 261120
          %v317 = vsel %vm315, %v294, 0
          %319 = vmatpush.bf16.msra.mxu0 0
          %320 = vmatpush.bf16.msra.mxu0 0
          %321 = vmatpush.bf16.msra.mxu0 0
          %322 = vmatpush.bf16.msra.mxu0 0
          %323 = vmatpush.bf16.msra.mxu0 0
          %324 = vmatpush.bf16.msra.mxu0 0
          %325 = vmatpush.bf16.msra.mxu0 %v312
          %326 = vmatpush.bf16.msra.mxu0 %v311
          %327 = vmatmul.bf16.gmra.mxu0 %v317
          %v328 = vpop.f32.mrf.mxu0
          %v329 = vadd.f32 %v301, %v328
          %v330 = vpop.f32.mrf.mxu0
          %331 = vdwg.mxu0
          %v332 = vmul.f32 %v329, 0.35355338
          %v333 = vpack.c.bf16 %v332, %v332
          %vm334 = vcmask 60416
          %335 = vst.msk [vmem:[#allocation2] sm:$0xf] %vm334, %v333
          %v336 = vpack.c.bf16 %v329, %v329
          %338 = vrot.lane.b32.xlu0 %v336, 96
          %v339 = vpop.permute.xlu0 %338
          %341 = vst.msk [vmem:[#allocation3] sm:$0xf] %vm334, %v339
          %342 = vrot.lane.b32.xlu0 %v336, 64
          %v343 = vpop.permute.xlu0 %342
          %345 = vst.msk [vmem:[#allocation4] sm:$0xf] %vm334, %v343
          %347 = vrot.lane.b32.xlu0 %v333, 120
          %v348 = vpop.permute.xlu0 %347
          %s350 = scalar_lea.vmem [#allocation2], 4
          %351 = vst.msk [vmem:[%s350] sm:$0xf] %vm334, %v348
          %352 = vrot.lane.b32.xlu0 %v336, 88
          %v353 = vpop.permute.xlu0 %352
          %s355 = scalar_lea.vmem [#allocation3], 4
          %356 = vst.msk [vmem:[%s355] sm:$0xf] %vm334, %v353
          %357 = vrot.lane.b32.xlu0 %v336, 56
          %v358 = vpop.permute.xlu0 %357
          %s360 = scalar_lea.vmem [#allocation4], 4
          %361 = vst.msk [vmem:[%s360] sm:$0xf] %vm334, %v358
          %362 = vrot.lane.b32.xlu0 %v333, 112
          %v363 = vpop.permute.xlu0 %362
          %s365 = scalar_lea.vmem [#allocation2], 8
          %366 = vst.msk [vmem:[%s365] sm:$0xf] %vm334, %v363
          %367 = vrot.lane.b32.xlu0 %v336, 80
          %v368 = vpop.permute.xlu0 %367
          %s370 = scalar_lea.vmem [#allocation3], 8
          %371 = vst.msk [vmem:[%s370] sm:$0xf] %vm334, %v368
          %372 = vrot.lane.b32.xlu0 %v336, 48
          %v373 = vpop.permute.xlu0 %372
          %s375 = scalar_lea.vmem [#allocation4], 8
          %376 = vst.msk [vmem:[%s375] sm:$0xf] %vm334, %v373
          %377 = vrot.lane.b32.xlu0 %v333, 104
          %v378 = vpop.permute.xlu0 %377
          %s380 = scalar_lea.vmem [#allocation2], 12
          %381 = vst.msk [vmem:[%s380] sm:$0xf] %vm334, %v378
          %382 = vrot.lane.b32.xlu0 %v336, 72
          %v383 = vpop.permute.xlu0 %382
          %s385 = scalar_lea.vmem [#allocation3], 12
          %386 = vst.msk [vmem:[%s385] sm:$0xf] %vm334, %v383
          %387 = vrot.lane.b32.xlu0 %v336, 40
          %v388 = vpop.permute.xlu0 %387
          %s390 = scalar_lea.vmem [#allocation4], 12
          %391 = vst.msk [vmem:[%s390] sm:$0xf] %vm334, %v388
        $region56: #{tpu_custom_call.1} parent=39 // pred_fallthru
          _
        %s392 = smul.u32 %s28, 8
        %s393 = sshra.s32 %s392, 3
        %s394 = sand.u32 %s392, 7
        %s395 = smul.addr %s393, 4
        %s396 = scalar_lea.vmem [#allocation2], %s395
        %v397 = vld [vmem:[%s396] sm:$0xf]
        %v398 = vld [vmem:[%s396 + $0x4] sm:$0xf]
        %v399 = vld [vmem:[%s396 + $0x8] sm:$0xf]
        %v400 = vld [vmem:[%s396 + $0xc] sm:$0xf]
        %v401 = vld [vmem:[#allocation3] sm:$0xf]
        %v402 = vld [vmem:[#allocation3 + $0x4] sm:$0xf]
        %v403 = vld [vmem:[#allocation3 + $0x8] sm:$0xf]
        %v404 = vld [vmem:[#allocation3 + $0xc] sm:$0xf]
        %vm405 = vcmask 64512
        %v407 = vsel %vm405, %v397, 0
        %v410 = vsel %vm405, %v401, 0
        %412 = vmatpush.bf16.xpose.msra.mxu0 0
        %413 = vmatpush.bf16.xpose.msra.mxu0 0
        %414 = vmatpush.bf16.xpose.msra.mxu0 0
        %415 = vmatpush.bf16.xpose.msra.mxu0 0
        %416 = vmatpush.bf16.xpose.msra.mxu0 0
        %417 = vmatpush.bf16.xpose.msra.mxu0 0
        %418 = vmatpush.bf16.xpose.msra.mxu0 0
        %419 = vmatpush.bf16.xpose.msra.mxu0 %v410
        %420 = vmatmul.bf16.gmra.mxu0 %v407
        %v421 = vpop.f32.mrf.mxu0
        %v422 = vadd.f32 0.0, %v421
        %v423 = vpop.f32.mrf.mxu0
        %424 = vdwg.mxu0
        %v426 = vsel %vm405, %v398, 0
        %v429 = vsel %vm405, %v402, 0
        %431 = vmatpush.bf16.xpose.msra.mxu0 0
        %432 = vmatpush.bf16.xpose.msra.mxu0 0
        %433 = vmatpush.bf16.xpose.msra.mxu0 0
        %434 = vmatpush.bf16.xpose.msra.mxu0 0
        %435 = vmatpush.bf16.xpose.msra.mxu0 0
        %436 = vmatpush.bf16.xpose.msra.mxu0 0
        %437 = vmatpush.bf16.xpose.msra.mxu0 0
        %438 = vmatpush.bf16.xpose.msra.mxu0 %v429
        %439 = vmatmul.bf16.gmra.mxu0 %v426
        %v440 = vpop.f32.mrf.mxu0
        %v441 = vadd.f32 0.0, %v440
        %v442 = vpop.f32.mrf.mxu0
        %443 = vdwg.mxu0
        %v445 = vsel %vm405, %v399, 0
        %v448 = vsel %vm405, %v403, 0
        %450 = vmatpush.bf16.xpose.msra.mxu0 0
        %451 = vmatpush.bf16.xpose.msra.mxu0 0
        %452 = vmatpush.bf16.xpose.msra.mxu0 0
        %453 = vmatpush.bf16.xpose.msra.mxu0 0
        %454 = vmatpush.bf16.xpose.msra.mxu0 0
        %455 = vmatpush.bf16.xpose.msra.mxu0 0
        %456 = vmatpush.bf16.xpose.msra.mxu0 0
        %457 = vmatpush.bf16.xpose.msra.mxu0 %v448
        %458 = vmatmul.bf16.gmra.mxu0 %v445
        %v459 = vpop.f32.mrf.mxu0
        %v460 = vadd.f32 0.0, %v459
        %v461 = vpop.f32.mrf.mxu0
        %462 = vdwg.mxu0
        %v464 = vsel %vm405, %v400, 0
        %v467 = vsel %vm405, %v404, 0
        %469 = vmatpush.bf16.xpose.msra.mxu0 0
        %470 = vmatpush.bf16.xpose.msra.mxu0 0
        %471 = vmatpush.bf16.xpose.msra.mxu0 0
        %472 = vmatpush.bf16.xpose.msra.mxu0 0
        %473 = vmatpush.bf16.xpose.msra.mxu0 0
        %474 = vmatpush.bf16.xpose.msra.mxu0 0
        %475 = vmatpush.bf16.xpose.msra.mxu0 0
        %476 = vmatpush.bf16.xpose.msra.mxu0 %v467
        %477 = vmatmul.bf16.gmra.mxu0 %v464
        %v478 = vpop.f32.mrf.mxu0
        %v479 = vadd.f32 0.0, %v478
        %v480 = vpop.f32.mrf.mxu0
        %481 = vdwg.mxu0
        %v482 = vsel %vm405, %v422, -inf
        %483 = vmax.xlane.f32.xlu0 %v482
        %v484 = vpop.xlane.xlu0 %483
        %v485 = vsel %vm405, %v441, -inf
        %486 = vmax.xlane.f32.xlu0 %v485
        %v487 = vpop.xlane.xlu0 %486
        %v488 = vsel %vm405, %v460, -inf
        %489 = vmax.xlane.f32.xlu0 %v488
        %v490 = vpop.xlane.xlu0 %489
        %v491 = vsel %vm405, %v479, -inf
        %492 = vmax.xlane.f32.xlu0 %v491
        %v493 = vpop.xlane.xlu0 %492
        %v494 = vsub.f32 %v422, %v484
        %v495 = vsub.f32 %v441, %v487
        %v496 = vsub.f32 %v460, %v490
        %v497 = vsub.f32 %v479, %v493
        %v498 = vmul.f32 %v494, 1.442695
        %v499 = vpow.pop %v498
        %v500 = vmul.f32 %v495, 1.442695
        %v501 = vpow.pop %v500
        %v502 = vmul.f32 %v496, 1.442695
        %v503 = vpow.pop %v502
        %v504 = vmul.f32 %v497, 1.442695
        %v505 = vpow.pop %v504
        %v506 = vsel %vm405, %v499, 0.0
        %507 = vadd.xlane.f32.xlu0 %v506
        %v508 = vpop.xlane.xlu0 %507
        %v509 = vsel %vm405, %v501, 0.0
        %510 = vadd.xlane.f32.xlu0 %v509
        %v511 = vpop.xlane.xlu0 %510
        %v512 = vsel %vm405, %v503, 0.0
        %513 = vadd.xlane.f32.xlu0 %v512
        %v514 = vpop.xlane.xlu0 %513
        %v515 = vsel %vm405, %v505, 0.0
        %516 = vadd.xlane.f32.xlu0 %v515
        %v517 = vpop.xlane.xlu0 %516
        %v518 = vrcp.pop %v508
        %v519 = vrcp.pop %v511
        %v520 = vrcp.pop %v514
        %v521 = vrcp.pop %v517
        %v522 = vmul.f32 %v499, %v518
        %v523 = vmul.f32 %v501, %v519
        %v524 = vmul.f32 %v503, %v520
        %v525 = vmul.f32 %v505, %v521
        %v526 = vpack.c.bf16 %v522, %v522
        %v527 = vpack.c.bf16 %v523, %v523
        %v528 = vpack.c.bf16 %v524, %v524
        %v529 = vpack.c.bf16 %v525, %v525
        %v530 = vld [vmem:[#allocation4] sm:$0xf]
        %v531 = vld [vmem:[#allocation4 + $0x4] sm:$0xf]
        %v532 = vld [vmem:[#allocation4 + $0x8] sm:$0xf]
        %v533 = vld [vmem:[#allocation4 + $0xc] sm:$0xf]
        %v535 = vsel %vm405, %v526, 0
        %vm537 = vcmask 1043456
        %v539 = vsel %vm537, %v530, 0
        %541 = vmatpush.bf16.msra.mxu0 0
        %542 = vmatpush.bf16.msra.mxu0 0
        %543 = vmatpush.bf16.msra.mxu0 0
        %544 = vmatpush.bf16.msra.mxu0 0
        %545 = vmatpush.bf16.msra.mxu0 0
        %546 = vmatpush.bf16.msra.mxu0 0
        %547 = vmatpush.bf16.msra.mxu0 0
        %548 = vmatpush.bf16.msra.mxu0 %v539
        %549 = vmatmul.bf16.gmra.mxu0 %v535
        %v550 = vpop.f32.mrf.mxu0
        %v551 = vadd.f32 0.0, %v550
        %v552 = vpop.f32.mrf.mxu0
        %553 = vdwg.mxu0
        %v555 = vsel %vm405, %v527, 0
        %v558 = vsel %vm537, %v531, 0
        %560 = vmatpush.bf16.msra.mxu0 0
        %561 = vmatpush.bf16.msra.mxu0 0
        %562 = vmatpush.bf16.msra.mxu0 0
        %563 = vmatpush.bf16.msra.mxu0 0
        %564 = vmatpush.bf16.msra.mxu0 0
        %565 = vmatpush.bf16.msra.mxu0 0
        %566 = vmatpush.bf16.msra.mxu0 0
        %567 = vmatpush.bf16.msra.mxu0 %v558
        %568 = vmatmul.bf16.gmra.mxu0 %v555
        %v569 = vpop.f32.mrf.mxu0
        %v570 = vadd.f32 0.0, %v569
        %v571 = vpop.f32.mrf.mxu0
        %572 = vdwg.mxu0
        %v574 = vsel %vm405, %v528, 0
        %v577 = vsel %vm537, %v532, 0
        %579 = vmatpush.bf16.msra.mxu0 0
        %580 = vmatpush.bf16.msra.mxu0 0
        %581 = vmatpush.bf16.msra.mxu0 0
        %582 = vmatpush.bf16.msra.mxu0 0
        %583 = vmatpush.bf16.msra.mxu0 0
        %584 = vmatpush.bf16.msra.mxu0 0
        %585 = vmatpush.bf16.msra.mxu0 0
        %586 = vmatpush.bf16.msra.mxu0 %v577
        %587 = vmatmul.bf16.gmra.mxu0 %v574
        %v588 = vpop.f32.mrf.mxu0
        %v589 = vadd.f32 0.0, %v588
        %v590 = vpop.f32.mrf.mxu0
        %591 = vdwg.mxu0
        %v593 = vsel %vm405, %v529, 0
        %v596 = vsel %vm537, %v533, 0
        %598 = vmatpush.bf16.msra.mxu0 0
        %599 = vmatpush.bf16.msra.mxu0 0
        %600 = vmatpush.bf16.msra.mxu0 0
        %601 = vmatpush.bf16.msra.mxu0 0
        %602 = vmatpush.bf16.msra.mxu0 0
        %603 = vmatpush.bf16.msra.mxu0 0
        %604 = vmatpush.bf16.msra.mxu0 0
        %605 = vmatpush.bf16.msra.mxu0 %v596
        %606 = vmatmul.bf16.gmra.mxu0 %v593
        %v607 = vpop.f32.mrf.mxu0
        %v608 = vadd.f32 0.0, %v607
        %v609 = vpop.f32.mrf.mxu0
        %610 = vdwg.mxu0
        %v611 = vpack.c.bf16 %v551, %v551
        %vm612 = vcmask 60416
        %613 = vst.msk [vmem:[#allocation5] sm:$0xf] %vm612, %v611
        %v614 = vpack.c.bf16 %v570, %v570
        %616 = vrot.lane.b32.xlu0 %v614, 8
        %v617 = vpop.permute.xlu0 %616
        %vm619 = vcmask 126016
        %620 = vst.msk [vmem:[#allocation5] sm:$0xf] %vm619, %v617
        %v621 = vpack.c.bf16 %v589, %v589
        %623 = vrot.lane.b32.xlu0 %v621, 16
        %v624 = vpop.permute.xlu0 %623
        %vm626 = vcmask 191616
        %627 = vst.msk [vmem:[#allocation5] sm:$0xf] %vm626, %v624
        %v628 = vpack.c.bf16 %v608, %v608
        %630 = vrot.lane.b32.xlu0 %v628, 24
        %v631 = vpop.permute.xlu0 %630
        %vm633 = vcmask 257216
        %634 = vst.msk [vmem:[#allocation5] sm:$0xf] %vm633, %v631
        %v635 = vld [vmem:[#allocation5] sm:$0xf]
        %v636 = vld [vmem:[#allocation11] sm:$0xf]
        %v637 = vld [vmem:[#allocation11 + $0x4] sm:$0xf]
        %v638 = vld [vmem:[#allocation11 + $0x8] sm:$0xf]
        %v639 = vld [vmem:[#allocation11 + $0xc] sm:$0xf]
        %v640 = vld [vmem:[%s4] sm:$0x1]
        %v642 = vperm.slane %v640, 0
        %v648 = vunpack.c.l.b16 %v636
        %v649 = vunpack.c.l.b16 %v637
        %v650 = vunpack.c.l.b16 %v638
        %v651 = vunpack.c.l.b16 %v639
        %v652 = vpack.c.b16 %v649, %v648
        %v653 = vpack.c.b16 %v651, %v650
        %vm656 = vcmask 261120
        %v658 = vsel %vm656, %v635, 0
        %660 = vmatpush.bf16.msra.mxu0 0
        %661 = vmatpush.bf16.msra.mxu0 0
        %662 = vmatpush.bf16.msra.mxu0 0
        %663 = vmatpush.bf16.msra.mxu0 0
        %664 = vmatpush.bf16.msra.mxu0 0
        %665 = vmatpush.bf16.msra.mxu0 0
        %666 = vmatpush.bf16.msra.mxu0 %v653
        %667 = vmatpush.bf16.msra.mxu0 %v652
        %668 = vmatmul.bf16.gmra.mxu0 %v658
        %v669 = vpop.f32.mrf.mxu0
        %v670 = vadd.f32 %v642, %v669
        %v671 = vpop.f32.mrf.mxu0
        %672 = vdwg.mxu0
        %673 = vst.msk [vmem:[%s288] sm:$0xff] %vm656, %v670
        %s674 = sand.u32 %s155, 1
        %s675 = scalar_lea.sflag [#allocation8], %s674
        %s676 = sand.u32 %s155, 1
        %s677 = smul.addr %s676, 8
        %s678 = scalar_lea.vmem [#allocation12], %s677
        // Predicated region
        $region57: #{tpu_custom_call.1} parent=39 // pred_check
          %p679 = pneg %p165
        $region58: #{tpu_custom_call.1} parent=39 // pred_check_branch
          %681 = sbr.rel (%p679) target = $region60
        $region59: #{tpu_custom_call.1} parent=39 // pred_region
          %683 = vsyncadd %s675, 0
          %s684 = sadd.s32 %s28, %s27
          %s685 = smul.addr %s684, 8
          %s686 = scalar_lea.hbm %s5, %s685
          %s688 = sshll.u32 %s678, 4
          %s689 = int_to_ptr.vmem [resolvable:$true] %s688
          %s690 = sshll.u32 %s686, 4
          %s691 = int_to_ptr.hbm [resolvable:$true] %s690
          %693 = dma.vmem_to_hbm [thread:$0]  %s689, 128, %s691, %s675
        $region60: #{tpu_custom_call.1} parent=39 // pred_fallthru
          _
      $region40: #{tpu_custom_call.1} parent=5 // pred_fallthru
        _
      %p694 = scmp.le.s32.totalorder 2, %s18
      // Predicated region
      $region61: #{tpu_custom_call.1} parent=5 // pred_check
        %p695 = pneg %p694
      $region62: #{tpu_custom_call.1} parent=5 // pred_check_branch
        %697 = sbr.rel (%p695) target = $region64
      $region63: #{tpu_custom_call.1} parent=5 // pred_region
        %s698 = ssub.s32 %s18, 2
        // Predicated region
        $region65: #{tpu_custom_call.1} parent=63 // pred_check
          %p699 = pneg %p171
        $region66: #{tpu_custom_call.1} parent=63 // pred_check_branch
          %701 = sbr.rel (%p699) target = $region68
        $region67: #{tpu_custom_call.1} parent=63 // pred_region
          %s702 = sand.u32 %s156, 1
          %s703 = scalar_lea.sflag [#allocation8], %s702
          %s704 = sand.u32 %s156, 1
          %s705 = smul.addr %s704, 8
          %s706 = scalar_lea.vmem [#allocation12], %s705
          %708 = dma.done %s703, 128
        $region68: #{tpu_custom_call.1} parent=63 // pred_fallthru
          _
      $region64: #{tpu_custom_call.1} parent=5 // pred_fallthru
        _
    $region6: #{tpu_custom_call.1} parent=1 // loop_footer
      %s22 = sadd.s32 1, %s18
    $region7: #{tpu_custom_call.1} parent=1 // loop_footer_branch
      %17 = sbr.rel target = $region3
    $region8: #{tpu_custom_call.1} parent=1 // loop_exit
      _
    %709 = vsyncpa [#allocation7], 1
    %s710 = scalar_lea.sflag [#allocation7], 1
    %711 = vsyncpa %s710, 1
    %712 = vsyncpa [#allocation10], 1
    %713 = vsyncpa [#allocation8], 1
    %s714 = scalar_lea.sflag [#allocation8], 1
    %715 = vsyncpa %s714, 1

</llo_original>
